<compile_context>
chip_gen: v7x
topology: tpu7x:2x2x1
jax: 0.10.0
libtpu: 0.0.40
codegen_flags: <defaults>
</compile_context>

<pallas_src>
import jax
import jax.numpy as jnp
from jax.experimental import pallas as pl
from jax.experimental.pallas import tpu as pltpu

_MIB = 1024 * 1024
_LANE = 128
# Widest-first lane-dense column candidates (all multiples of 128).
_LANE_DENSE_CANDIDATES = (32768, 16384, 8192, 4096, 2048, 1024, 512, 256, 128)
_MAX_DMA_CHUNKS = 8
_MIN_DMA_CHUNK_BYTES = 4 * _MIB


# ----------------------------------------------------------------------------
# Generation-aware sizing helpers
# ----------------------------------------------------------------------------
def _vmem_plan():
    """(max_block_bytes, vmem_limit_bytes) sized per TPU generation.

    v5e/v6e: 128 MiB physical VMEM -> 16 MiB blocks, 72 MiB scoped limit
    ((in+out) x 2 double buffers = 64 MiB, with headroom).
    v7x: 64 MiB physical VMEM -> 8 MiB blocks, 40 MiB limit (32 MiB buffers).
    Unknown hardware -> the smaller (v7x-safe) plan.
    """
    try:
        cap = int(pltpu.get_tpu_info().vmem_capacity_bytes)
    except Exception:
        cap = 64 * _MIB
    if cap >= 96 * _MIB:
        return 16 * _MIB, 72 * _MIB
    return 8 * _MIB, 40 * _MIB


def _sublane_for(dtype):
    """Dtype-aware sublane tile height: 8 for f32, 16 for bf16, 32 for int8/fp8."""
    itemsize = jnp.dtype(dtype).itemsize
    return 8 * max(1, 4 // max(1, itemsize))


def _lane_dense_layout(n, sublane):
    """Pick (rows, cols) with cols a multiple of 128 dividing n.

    Prefers the widest cols whose row count is 1 or a multiple of the dtype
    sublane; otherwise falls back to the widest divisor found.
    """
    divisors = [c for c in _LANE_DENSE_CANDIDATES if n % c == 0]
    if not divisors:
        return None
    for c in divisors:  # widest first
        r = n // c
        if r == 1 or r % sublane == 0:
            return r, c
    c = divisors[0]
    return n // c, c


# ----------------------------------------------------------------------------
# Primary materialized-identity path: direct HBM -> HBM DMA (no VMEM staging)
# ----------------------------------------------------------------------------
def _pallas_identity_dma(x, max_chunks=_MAX_DMA_CHUNKS,
                         min_chunk_bytes=_MIN_DMA_CHUNK_BYTES):
    """Materialize a fresh copy of x with chunked HBM->HBM DMA.

    Both operands live in memory_space=pl.ANY (HBM); the kernel issues one
    async copy per leading-dim chunk (each with its own DMA semaphore), keeps
    all of them in flight concurrently, then waits. No VMEM tiles, no vector
    load/store work, no per-grid-step pipeline overhead.
    """
    if x.size == 0:
        return x
    orig_shape = x.shape
    xw = x.reshape(1, 1) if x.ndim == 0 else x

    lead = xw.shape[0]
    total_bytes = xw.size * xw.dtype.itemsize
    by_bytes = total_bytes // max(1, min_chunk_bytes)
    num_chunks = int(max(1, min(max_chunks, lead, by_bytes if by_bytes > 0 else 1)))
    chunk = -(-lead // num_chunks)  # ceil div

    bounds = []
    start = 0
    while start < lead:
        size = min(chunk, lead - start)
        bounds.append((start, size))
        start += size
    num_chunks = len(bounds)

    def kernel(x_hbm, o_hbm, sems):
        copies = []
        for c, (s, sz) in enumerate(bounds):
            cp = pltpu.make_async_copy(
                x_hbm.at[pl.ds(s, sz)],
                o_hbm.at[pl.ds(s, sz)],
                sems.at[c],
            )
            cp.start()
            copies.append(cp)
        for cp in copies:
            cp.wait()

    out = pl.pallas_call(
        kernel,
        out_shape=jax.ShapeDtypeStruct(xw.shape, xw.dtype),
        in_specs=[pl.BlockSpec(memory_space=pl.ANY)],
        out_specs=pl.BlockSpec(memory_space=pl.ANY),
        scratch_shapes=[pltpu.SemaphoreType.DMA((num_chunks,))],
    )(xw)
    return out.reshape(orig_shape)


# ----------------------------------------------------------------------------
# Alternative materialized-identity path: lane-dense, VMEM-tiled pipelined copy
# ----------------------------------------------------------------------------
def _identity_copy_kernel(x_ref, o_ref):
    # Pure pass-through tile copy (the "universal forward" with no children).
    o_ref[...] = x_ref[...]


def _pallas_identity_vmem(x, max_block_bytes=None, core_parallel=False):
    """Identity via a tiled, lane-dense, double-buffered VMEM copy.

    Kept as an alternative to the DMA path. Block sizes and the scoped-VMEM
    limit are chosen per TPU generation; row tiles are dtype-sublane aligned;
    odd (non-multiple-of-128) shapes are row-tiled rather than loaded as one
    giant block. Set core_parallel=True on v7x (2 TensorCores/chip) to shard
    the tile loop across cores; plain "parallel" is used otherwise.
    """
    if x.size == 0:
        return x

    orig_shape = x.shape
    n = x.size
    dtype = x.dtype
    itemsize = jnp.dtype(dtype).itemsize
    sublane = _sublane_for(dtype)
    plan_block, vmem_limit = _vmem_plan()
    if max_block_bytes is None:
        max_block_bytes = plan_block

    layout = _lane_dense_layout(n, sublane)
    if layout is not None:
        rows, cols = layout
    else:
        # Odd total size: keep the full last dim as lanes (a block dim equal to
        # the full array dim is always legal) and tile the row dim.
        if x.ndim == 0:
            rows, cols = 1, 1
        elif x.ndim == 1:
            rows, cols = 1, n
        else:
            cols = orig_shape[-1]
            rows = n // cols
    x2 = x.reshape(rows, cols)

    row_bytes = cols * itemsize
    max_rows = max(1, max_block_bytes // row_bytes)
    if rows <= max_rows:
        block_rows = rows  # whole array in a single block (always legal)
    else:
        block_rows = max(sublane, (max_rows // sublane) * sublane)
        block_rows = min(block_rows, rows)

    # If even the smallest legal tile would not fit the per-generation VMEM
    # budget (in + out, double-buffered), skip VMEM staging entirely.
    if block_rows * row_bytes * 4 > vmem_limit:
        return _pallas_identity_dma(x)

    dim_semantics = (pltpu.CORE_PARALLEL,) if core_parallel else ("parallel",)
    grid = (pl.cdiv(rows, block_rows),)
    # Note: for grid == 1 a pipeline depth of 1 (pl.Buffered(1)) would drop the
    # unused second buffer; default depth is kept for maximum portability.
    out = pl.pallas_call(
        _identity_copy_kernel,
        out_shape=jax.ShapeDtypeStruct((rows, cols), dtype),
        grid=grid,
        in_specs=[pl.BlockSpec((block_rows, cols), lambda i: (i, 0))],
        out_specs=pl.BlockSpec((block_rows, cols), lambda i: (i, 0)),
        compiler_params=pltpu.CompilerParams(
            dimension_semantics=dim_semantics,
            vmem_limit_bytes=vmem_limit,
        ),
    )(x2)
    return out.reshape(orig_shape)


# ----------------------------------------------------------------------------
# Module wrapper (matches the PyTorch ModuleWrapper semantics)
# ----------------------------------------------------------------------------
class ModuleWrapper:
    """JAX/Pallas port of the PyTorch ModuleWrapper.

    Children (if any) are callables applied sequentially in forward(). As
    constructed (no children), forward is the identity:
      * default: zero-cost pass-through (`return x`) — no kernel, no HBM traffic;
      * materialize_identity=True: same semantics, but a fresh output buffer is
        produced, by default via the chunked HBM->HBM DMA kernel
        (identity_method="dma"), or via the tiled VMEM copy ("vmem").
    """

    def __init__(self, materialize_identity=False, identity_method="dma"):
        self._children = []  # ModuleWrapper registers no children.
        self._flags = {}
        self._materialize_identity = materialize_identity
        self._identity_method = identity_method

    def add_child(self, fn):
        # Children of the original ResNet (BBBConv2d etc.) would be registered
        # here as their own Pallas kernels; ModuleWrapper itself defines none.
        self._children.append(fn)

    def children(self):
        return list(self._children)

    def set_flag(self, flag_name, value):
        self._flags[flag_name] = value
        setattr(self, flag_name, value)
        for m in self._children:
            if hasattr(m, "set_flag"):
                m.set_flag(flag_name, value)

    def forward(self, x):
        if not self._children:
            if self._materialize_identity:
                if self._identity_method == "vmem":
                    return _pallas_identity_vmem(x)
                return _pallas_identity_dma(x)
            # Exact PyTorch semantics, zero overhead: no kernel launch,
            # no HBM round trip.
            return x
        # TODO(synk): when elementwise children exist, fuse their bodies into a
        # single tiled pallas_call instead of chaining per-child HBM round trips.
        for module in self._children:
            x = module(x)
        return x

    def __call__(self, x):
        return self.forward(x)


if __name__ == "__main__":
    key = jax.random.PRNGKey(0)
    # NCHW, small shapes consistent with a conv-net input.
    x = jax.random.normal(key, (2, 4, 16, 16), dtype=jnp.float32)

    # 1) Default (fast) path: no children -> identity with no kernel launch.
    model = ModuleWrapper()
    y_fast = model(x)
    assert y_fast.shape == x.shape and y_fast.dtype == x.dtype
    assert bool(jnp.all(y_fast == x))

    # 2) Materialized path: identical semantics via the HBM->HBM DMA kernel.
    model_mat = ModuleWrapper(materialize_identity=True)
    y = jax.block_until_ready(model_mat(x))
    assert y.shape == x.shape and y.dtype == x.dtype
    assert bool(jnp.all(y == x))

    # 3) Multi-chunk DMA path: several copies in flight, one semaphore each.
    x2 = jax.random.normal(jax.random.PRNGKey(1), (8, 16, 32, 32), jnp.float32)
    y2 = jax.block_until_ready(
        _pallas_identity_dma(x2, max_chunks=8, min_chunk_bytes=64 * 1024))
    assert bool(jnp.all(y2 == x2))

    # 4) VMEM-tiled alternative: multi-tile grid (small block cap), f32 then
    #    bf16 to exercise the dtype-aware sublane alignment.
    x3 = jax.random.normal(jax.random.PRNGKey(2), (64, 3, 16, 16), jnp.float32)
    y3 = jax.block_until_ready(_pallas_identity_vmem(x3, max_block_bytes=64 * 1024))
    assert bool(jnp.all(y3 == x3))

    x4 = x3.astype(jnp.bfloat16)
    y4 = jax.block_until_ready(_pallas_identity_vmem(x4, max_block_bytes=64 * 1024))
    assert bool(jnp.all(y4 == x4))

    # 5) Odd (non-multiple-of-128) shape: tiled fallback path (rows are tiled,
    #    never a single giant block), plus the same shape through the DMA path.
    x5 = jax.random.normal(jax.random.PRNGKey(3), (33, 7, 5), jnp.float32)
    y5 = jax.block_until_ready(_pallas_identity_vmem(x5, max_block_bytes=1024))
    assert bool(jnp.all(y5 == x5))
    y6 = jax.block_until_ready(_pallas_identity_dma(x5))
    assert bool(jnp.all(y6 == x5))

    print("KERNEL_OK")
</pallas_src>

<mosaic_0001>
module attributes {stable_mosaic.version = 11 : i64} {
  func.func @kernel(%arg0: memref<2x4x16x16xf32, #tpu.memory_space<any>>, %arg1: memref<2x4x16x16xf32, #tpu.memory_space<any>>, %arg2: memref<1x!tpu.dma_semaphore, #tpu.memory_space<semaphore_mem>>) attributes {dimension_semantics = [], scalar_prefetch = 0 : i64, scratch_operands = 1 : i64, tpu.core_type = #tpu.core_type<tc>} {
    %c0_i32 = arith.constant 0 : i32
    %c0_i32_0 = arith.constant 0 : i32
    %c0_i32_1 = arith.constant 0 : i32
    %c0_i32_2 = arith.constant 0 : i32
    %c0_i32_3 = arith.constant 0 : i32
    %0 = tpu.memref_slice %arg0[%c0_i32_0, %c0_i32_1, %c0_i32_2, %c0_i32_3] : memref<2x4x16x16xf32, #tpu.memory_space<any>> -> memref<2x4x16x16xf32, #tpu.memory_space<any>>
    %c0_i32_4 = arith.constant 0 : i32
    %c0_i32_5 = arith.constant 0 : i32
    %c0_i32_6 = arith.constant 0 : i32
    %c0_i32_7 = arith.constant 0 : i32
    %1 = tpu.memref_slice %arg1[%c0_i32_4, %c0_i32_5, %c0_i32_6, %c0_i32_7] : memref<2x4x16x16xf32, #tpu.memory_space<any>> -> memref<2x4x16x16xf32, #tpu.memory_space<any>>
    %2 = tpu.memref_slice %arg2[%c0_i32] : memref<1x!tpu.dma_semaphore, #tpu.memory_space<semaphore_mem>> -> memref<1x!tpu.dma_semaphore, #tpu.memory_space<semaphore_mem>>
    %3 = tpu.memref_squeeze %2 : memref<1x!tpu.dma_semaphore, #tpu.memory_space<semaphore_mem>> -> memref<!tpu.dma_semaphore, #tpu.memory_space<semaphore_mem>>
    tpu.enqueue_dma source(%0 : memref<2x4x16x16xf32, #tpu.memory_space<any>>) target(%1 : memref<2x4x16x16xf32, #tpu.memory_space<any>>) target_semaphore(%3 : memref<!tpu.dma_semaphore, #tpu.memory_space<semaphore_mem>>)
    %c0_i32_8 = arith.constant 0 : i32
    %c0_i32_9 = arith.constant 0 : i32
    %c0_i32_10 = arith.constant 0 : i32
    %c0_i32_11 = arith.constant 0 : i32
    %c0_i32_12 = arith.constant 0 : i32
    %4 = tpu.memref_slice %arg0[%c0_i32_9, %c0_i32_10, %c0_i32_11, %c0_i32_12] : memref<2x4x16x16xf32, #tpu.memory_space<any>> -> memref<2x4x16x16xf32, #tpu.memory_space<any>>
    %c0_i32_13 = arith.constant 0 : i32
    %c0_i32_14 = arith.constant 0 : i32
    %c0_i32_15 = arith.constant 0 : i32
    %c0_i32_16 = arith.constant 0 : i32
    %5 = tpu.memref_slice %arg1[%c0_i32_13, %c0_i32_14, %c0_i32_15, %c0_i32_16] : memref<2x4x16x16xf32, #tpu.memory_space<any>> -> memref<2x4x16x16xf32, #tpu.memory_space<any>>
    %6 = tpu.memref_slice %arg2[%c0_i32_8] : memref<1x!tpu.dma_semaphore, #tpu.memory_space<semaphore_mem>> -> memref<1x!tpu.dma_semaphore, #tpu.memory_space<semaphore_mem>>
    %7 = tpu.memref_squeeze %6 : memref<1x!tpu.dma_semaphore, #tpu.memory_space<semaphore_mem>> -> memref<!tpu.dma_semaphore, #tpu.memory_space<semaphore_mem>>
    tpu.wait_dma2 semaphore(%7 : memref<!tpu.dma_semaphore, #tpu.memory_space<semaphore_mem>>) src(%4 : memref<2x4x16x16xf32, #tpu.memory_space<any>>) dst(%5 : memref<2x4x16x16xf32, #tpu.memory_space<any>>)
    return
  }
}

</mosaic_0001>

<llo_original>
// kernel: tpu_custom_call.1
$region0: #{tpu_custom_call.1}
  #allocation0 [shape = 'u32[]', space=smem, size = 0x4, offset = 0x4, fixed_abs, tag = 'smem constant byte address 0x4 - core index']
  #allocation1 [shape = 'u32[144,128]{1,0:T(1,128)}', space=vmem, size = 0x12000, scoped, tag = 'internal scratch']
  #allocation2 [shape = 's32[1]{0}', space=sflag, size = 0x4, scoped, tag = 'scratch operand']
  #allocation3 [shape = 's32[]', space=sflag, size = 0x4, offset = 0, fixed_abs, tag = 'sflag constant byte address 0x0 - dummy sync flag']
  #allocation4 [shape = 'u32[0]{0}', space=smem, size = 0, offset = 0, fixed_abs, tag = 'smem constant byte address 0x0 - null']
  %s0 = inlined_call_operand.hbm [shape: f32[2,4,16,16], index: 0, kind: input, shape index: {}]
  %s1 = inlined_call_operand.hbm [shape: f32[2,4,16,16], index: 1, kind: output, shape index: {}]
  %s2 = sld [smem:[#allocation0]]
  $region2: #{tpu_custom_call.1} parent=0
    _
  %s4 = ssub.s32 1, %s2
  %s5 = scalar_select 0, %s4, %s2
  %s7 = sshll.u32 1, 14
  %s8 = sxor.u32 4294967295, %s7
  %s11 = sshll.u32 3, 24
  %s12 = sxor.u32 4294967295, %s11
  %s13 = sand.u32 0, %s12
  %s15 = sor.u32 %s13, 0
  %18 = dma.general %s0, 2048, %s1, [#allocation2], [#allocation3], [#allocation4], %s15, 0
  %s19 = smul.u32 2, 4
  %s20 = smul.u32 %s19, 16
  %s21 = smul.u32 %s20, 1
  %s22 = sshll.u32 %s21, 4
  %23 = dma.done [#allocation2], %s22
  %24 = vsyncmov [#allocation2]
  %s25 = vpop.sfrf %24
  %p26 = scmp.eq.s32.totalorder %s25, 0
  %p27 = pneg %p26
  %29 = shalt.err (%p27)

</llo_original>
